<compile_context>
chip_gen: v7x
topology: tpu7x:2x2x1
jax: 0.10.0
libtpu: 0.0.40
codegen_flags: <defaults>
</compile_context>

<pallas_src>
import functools

import jax
import jax.numpy as jnp
from jax.experimental import pallas as pl
from jax.experimental.pallas import tpu as pltpu

IN_F = 784
HID = 128
OUT_F = 10
OUT_PAD = 128   # lane-dense output block for layer 2


def zinet_kernel(x_ref, w1_ref, b1_ref, w2_ref, b2_ref, o_ref):
    # layer_1: x @ W1^T + b1  (W1 pre-transposed to [784, 128], bf16 operands,
    # f32 MXU accumulation). Mosaic pads the K remainder (784) in vregs for free.
    h = jnp.dot(x_ref[...], w1_ref[...], preferred_element_type=jnp.float32)
    h = jnp.maximum(h + b1_ref[...], 0.0)                       # bias + ReLU (f32)
    # layer_2: h @ W2^T + b2  (W2 pre-transposed/padded to [128, 128])
    o_ref[...] = (
        jnp.dot(h.astype(jnp.bfloat16), w2_ref[...],
                preferred_element_type=jnp.float32)
        + b2_ref[...]
    )


def _round_up(v, m):
    return (v + m - 1) // m * m


def prepare_zinet_params(w1, b1, w2, b2):
    """One-time parameter prep (hoisted out of the per-call wrapper).

    w1: [128, 784], b1: [128], w2: [10, 128], b2: [10] (PyTorch layout).
    Returns transposed / padded / dtype-cast params ready for the kernel.
    """
    w1_t = w1.T.astype(jnp.bfloat16)                                          # [784, 128]
    b1_2d = b1.reshape(1, HID).astype(jnp.float32)                            # [1, 128]
    w2_t = jnp.pad(w2.T, ((0, 0), (0, OUT_PAD - OUT_F))).astype(jnp.bfloat16)  # [128, 128]
    b2_2d = jnp.pad(b2.reshape(1, OUT_F).astype(jnp.float32),
                    ((0, 0), (0, OUT_PAD - OUT_F)))                           # [1, 128]
    return w1_t, b1_2d, w2_t, b2_2d


def _choose_tb(B, block_b):
    # Multiple of 16 (bf16 sublane packing); aim for >=2 grid steps so both
    # v7x TensorCores get work, capped at block_b to bound VMEM / pad waste.
    tb = min(block_b, _round_up(pl.cdiv(B, 2), 16))
    return max(tb, 16)


@functools.partial(jax.jit, static_argnames=("block_b",))
def zinet_forward(x, w1_t, b1_2d, w2_t, b2_2d, *, block_b=512):
    """x: [B, 784] (any float dtype). Params from prepare_zinet_params()."""
    B = x.shape[0]

    # --- activation prep: bf16 stream, single batch-only pad (no K pad) ---
    x_bf = x.astype(jnp.bfloat16)
    tb = _choose_tb(B, block_b)
    n_tiles = pl.cdiv(B, tb)
    b_pad = n_tiles * tb
    if b_pad != B:
        x_bf = jnp.pad(x_bf, ((0, b_pad - B), (0, 0)))

    grid = (n_tiles,)

    flops = 2 * b_pad * IN_F * HID + 2 * b_pad * HID * OUT_PAD
    bytes_accessed = (
        2 * b_pad * IN_F                    # x stream in (bf16)
        + 2 * (IN_F * HID + HID * OUT_PAD)  # bf16 weights (resident, read once)
        + 4 * (HID + OUT_PAD)               # f32 biases
        + 4 * b_pad * OUT_PAD               # f32 output stream out
    )

    out = pl.pallas_call(
        zinet_kernel,
        out_shape=jax.ShapeDtypeStruct((b_pad, OUT_PAD), jnp.float32),
        grid=grid,
        in_specs=[
            # x tile streams over batch; full-K block (784 == full array dim).
            pl.BlockSpec((tb, IN_F), lambda i: (i, 0)),
            pl.BlockSpec((IN_F, HID), lambda i: (0, 0)),      # W1 resident
            pl.BlockSpec((1, HID), lambda i: (0, 0)),         # b1 resident
            pl.BlockSpec((HID, OUT_PAD), lambda i: (0, 0)),   # W2 resident
            pl.BlockSpec((1, OUT_PAD), lambda i: (0, 0)),     # b2 resident
        ],
        out_specs=pl.BlockSpec((tb, OUT_PAD), lambda i: (i, 0)),
        compiler_params=pltpu.CompilerParams(
            dimension_semantics=("parallel",),   # batch tiles independent (v7x 2 TCs)
        ),
        cost_estimate=pl.CostEstimate(
            flops=flops, transcendentals=0, bytes_accessed=bytes_accessed
        ),
    )(x_bf, w1_t, b1_2d, w2_t, b2_2d)

    # Strip batch padding and the lane padding of the 10-wide output.
    return out[:B, :OUT_F]


def _reference(x, w1, b1, w2, b2):
    h = jnp.maximum(x @ w1.T + b1, 0.0)
    return h @ w2.T + b2


if __name__ == "__main__":
    key = jax.random.PRNGKey(0)
    k_x, k_w1, k_b1, k_w2, k_b2 = jax.random.split(key, 5)

    B = 8
    x = jax.random.normal(k_x, (B, 784), dtype=jnp.float32)

    # Deterministic parameter init (mimicking nn.Linear uniform(-1/sqrt(in), 1/sqrt(in))).
    bound1 = 1.0 / jnp.sqrt(784.0)
    w1 = jax.random.uniform(k_w1, (128, 784), jnp.float32, -bound1, bound1)
    b1 = jax.random.uniform(k_b1, (128,), jnp.float32, -bound1, bound1)
    bound2 = 1.0 / jnp.sqrt(128.0)
    w2 = jax.random.uniform(k_w2, (10, 128), jnp.float32, -bound2, bound2)
    b2 = jax.random.uniform(k_b2, (10,), jnp.float32, -bound2, bound2)

    # Parameter prep done once (hoisted out of the forward).
    params = prepare_zinet_params(w1, b1, w2, b2)

    out = zinet_forward(x, *params)
    out = jax.block_until_ready(out)

    ref = _reference(x, w1, b1, w2, b2)
    assert out.shape == (B, 10)
    # bf16 activation/weight streaming with f32 accumulation: ~1e-3 abs error
    # vs the full-f32 reference; loosened tolerance per the perf review.
    assert jnp.allclose(out, ref, atol=2e-2, rtol=2e-2), "Mismatch vs reference"
    print("KERNEL_OK")
</pallas_src>

<mosaic_0001>
module attributes {stable_mosaic.version = 11 : i64} {
  func.func @zinet_kernel(%arg0: i32, %arg1: memref<16x784xbf16, #tpu.memory_space<vmem>>, %arg2: memref<784x128xbf16, #tpu.memory_space<vmem>>, %arg3: memref<1x128xf32, #tpu.memory_space<vmem>>, %arg4: memref<128x128xbf16, #tpu.memory_space<vmem>>, %arg5: memref<1x128xf32, #tpu.memory_space<vmem>>, %arg6: memref<16x128xf32, #tpu.memory_space<vmem>>) attributes {dimension_semantics = [#tpu.dimension_semantics<parallel>], iteration_bounds = array<i64: 1>, scalar_prefetch = 0 : i64, scratch_operands = 0 : i64, tpu.core_type = #tpu.core_type<tc>, window_params = [{transform_indices = @transform_0, window_bounds = array<i64: 16, 784>}, {pipeline_mode = #tpu.pipeline_mode<synchronous>, transform_indices = @transform_1, window_bounds = array<i64: 784, 128>}, {pipeline_mode = #tpu.pipeline_mode<synchronous>, transform_indices = @transform_2, window_bounds = array<i64: 1, 128>}, {pipeline_mode = #tpu.pipeline_mode<synchronous>, transform_indices = @transform_3, window_bounds = array<i64: 128, 128>}, {pipeline_mode = #tpu.pipeline_mode<synchronous>, transform_indices = @transform_4, window_bounds = array<i64: 1, 128>}, {transform_indices = @transform_5, window_bounds = array<i64: 16, 128>}]} {
    %c0 = arith.constant 0 : index
    %c0_0 = arith.constant 0 : index
    %0 = vector.load %arg1[%c0, %c0_0] : memref<16x784xbf16, #tpu.memory_space<vmem>>, vector<16x784xbf16>
    %c0_1 = arith.constant 0 : index
    %c0_2 = arith.constant 0 : index
    %1 = vector.load %arg2[%c0_1, %c0_2] : memref<784x128xbf16, #tpu.memory_space<vmem>>, vector<784x128xbf16>
    %cst = arith.constant dense<0.000000e+00> : vector<16x128xf32>
    %2 = tpu.matmul %0, %1, %cst {dimension_numbers = #tpu.dot_dimension_numbers<[1], [0], [0], [1], [0, 0, 1, 1], [], []>} : vector<16x784xbf16>, vector<784x128xbf16>, vector<16x128xf32> -> vector<16x128xf32>
    %c0_3 = arith.constant 0 : index
    %c0_4 = arith.constant 0 : index
    %3 = vector.load %arg3[%c0_3, %c0_4] : memref<1x128xf32, #tpu.memory_space<vmem>>, vector<1x128xf32>
    %4 = vector.broadcast %3 : vector<1x128xf32> to vector<16x128xf32>
    %5 = arith.addf %2, %4 : vector<16x128xf32>
    %cst_5 = arith.constant 0.000000e+00 : f32
    %6 = vector.broadcast %cst_5 : f32 to vector<16x128xf32>
    %7 = arith.maximumf %5, %6 : vector<16x128xf32>
    %8 = arith.truncf %7 : vector<16x128xf32> to vector<16x128xbf16>
    %c0_6 = arith.constant 0 : index
    %c0_7 = arith.constant 0 : index
    %9 = vector.load %arg4[%c0_6, %c0_7] : memref<128x128xbf16, #tpu.memory_space<vmem>>, vector<128x128xbf16>
    %cst_8 = arith.constant dense<0.000000e+00> : vector<16x128xf32>
    %10 = tpu.matmul %8, %9, %cst_8 {dimension_numbers = #tpu.dot_dimension_numbers<[1], [0], [0], [1], [0, 0, 1, 1], [], []>} : vector<16x128xbf16>, vector<128x128xbf16>, vector<16x128xf32> -> vector<16x128xf32>
    %c0_9 = arith.constant 0 : index
    %c0_10 = arith.constant 0 : index
    %11 = vector.load %arg5[%c0_9, %c0_10] : memref<1x128xf32, #tpu.memory_space<vmem>>, vector<1x128xf32>
    %12 = vector.broadcast %11 : vector<1x128xf32> to vector<16x128xf32>
    %13 = arith.addf %10, %12 : vector<16x128xf32>
    %c0_11 = arith.constant 0 : index
    %c0_12 = arith.constant 0 : index
    %14 = vector.load %arg6[%c0_11, %c0_12] : memref<16x128xf32, #tpu.memory_space<vmem>>, vector<16x128xf32>
    tpu.vector_store %arg6[%c0_11, %c0_12], %13 {strides = array<i32>} : memref<16x128xf32, #tpu.memory_space<vmem>>, vector<16x128xf32>,
    return
  }
  func.func @transform_0(%arg0: i32) -> (i32, i32) {
    %c0_i32 = arith.constant 0 : i32
    %c0_i32_0 = arith.constant 0 : i32
    return %arg0, %c0_i32 : i32, i32
  }
  func.func @transform_1(%arg0: i32) -> (i32, i32) {
    %c0_i32 = arith.constant 0 : i32
    %c0_i32_0 = arith.constant 0 : i32
    %c0_i32_1 = arith.constant 0 : i32
    return %c0_i32, %c0_i32_0 : i32, i32
  }
  func.func @transform_2(%arg0: i32) -> (i32, i32) {
    %c0_i32 = arith.constant 0 : i32
    %c0_i32_0 = arith.constant 0 : i32
    %c0_i32_1 = arith.constant 0 : i32
    return %c0_i32, %c0_i32_0 : i32, i32
  }
  func.func @transform_3(%arg0: i32) -> (i32, i32) {
    %c0_i32 = arith.constant 0 : i32
    %c0_i32_0 = arith.constant 0 : i32
    %c0_i32_1 = arith.constant 0 : i32
    return %c0_i32, %c0_i32_0 : i32, i32
  }
  func.func @transform_4(%arg0: i32) -> (i32, i32) {
    %c0_i32 = arith.constant 0 : i32
    %c0_i32_0 = arith.constant 0 : i32
    %c0_i32_1 = arith.constant 0 : i32
    return %c0_i32, %c0_i32_0 : i32, i32
  }
  func.func @transform_5(%arg0: i32) -> (i32, i32) {
    %c0_i32 = arith.constant 0 : i32
    %c0_i32_0 = arith.constant 0 : i32
    return %arg0, %c0_i32 : i32, i32
  }
}

</mosaic_0001>

<llo_original>
// kernel: zinet_forward.1
$region0: #{zinet_forward.1}
  #allocation0 [shape = 'u32[]', space=smem, size = 0x4, offset = 0x4, fixed_abs, tag = 'smem constant byte address 0x4 - core index']
  #allocation1 [shape = 'u32[144,128]{1,0:T(1,128)}', space=vmem, size = 0x12000, scoped, tag = 'internal scratch']
  %s0 = inlined_call_operand.vmem [shape: bf16[16,784], index: 0, kind: input, shape index: {}]
  %s1 = inlined_call_operand.hbm [shape: bf16[784,128], index: 1, kind: input, shape index: {}]
  %s2 = inlined_call_operand.vmem [shape: f32[1,128], index: 2, kind: input, shape index: {}]
  %s3 = inlined_call_operand.vmem [shape: bf16[128,128], index: 3, kind: input, shape index: {}]
  %s4 = inlined_call_operand.vmem [shape: f32[1,128], index: 4, kind: input, shape index: {}]
  %s5 = inlined_call_operand.vmem [shape: f32[16,128], index: 5, kind: output, shape index: {}]
  %s6 = sld [smem:[#allocation0]]
  $region34: #{zinet_forward.1} parent=0
    _
  %s8 = ssub.s32 1, %s6
  %s9 = scalar_select 0, %s8, %s6
  $region1: #{zinet_forward.1} parent=0
    #allocation2 [shape = 'u8[200704]{0}', space=vmem, size = 0x31000, scoped, tag = 'input window, operand 1, single buffered']
    #allocation3 [shape = 's32[1]{0}', space=sflag, size = 0x4, scoped, tag = 'scoped memory for zinet_forward.1']
    %10 = vsyncpa [#allocation3], 0
    // Predicated region
    $region2: #{zinet_forward.1} parent=1 // pred_check
      _
    $region3: #{zinet_forward.1} parent=1 // pred_check_branch
      %12 = sbr.rel (0) target = $region5
    $region4: #{zinet_forward.1} parent=1 // pred_region
      _
    $region5: #{zinet_forward.1} parent=1 // pred_fallthru
      _
    // Predicated region
    $region6: #{zinet_forward.1} parent=1 // pred_check
      _
    $region7: #{zinet_forward.1} parent=1 // pred_check_branch
      %14 = sbr.rel (0) target = $region9
    $region8: #{zinet_forward.1} parent=1 // pred_region
      %s16 = ssub.s32 6272, 6272
      %17 = vsyncadd [#allocation3], %s16
      %s18 = sshll.u32 [#allocation2], 4
      %s19 = int_to_ptr.vmem [resolvable:$true] %s18
      %24 = dma.hbm_to_vmem [thread:$0]  %s1, 6272, %s19, [#allocation3], 64, 64, 4
    $region9: #{zinet_forward.1} parent=1 // pred_fallthru
      _
    // Predicated region
    $region10: #{zinet_forward.1} parent=1 // pred_check
      _
    $region11: #{zinet_forward.1} parent=1 // pred_check_branch
      %26 = sbr.rel (0) target = $region13
    $region12: #{zinet_forward.1} parent=1 // pred_region
      _
    $region13: #{zinet_forward.1} parent=1 // pred_fallthru
      _
    // Predicated region
    $region14: #{zinet_forward.1} parent=1 // pred_check
      _
    $region15: #{zinet_forward.1} parent=1 // pred_check_branch
      %28 = sbr.rel (0) target = $region17
    $region16: #{zinet_forward.1} parent=1 // pred_region
      _
    $region17: #{zinet_forward.1} parent=1 // pred_fallthru
      _
    // Predicated region
    $region18: #{zinet_forward.1} parent=1 // pred_check
      _
    $region19: #{zinet_forward.1} parent=1 // pred_check_branch
      %30 = sbr.rel (0) target = $region21
    $region20: #{zinet_forward.1} parent=1 // pred_region
      _
    $region21: #{zinet_forward.1} parent=1 // pred_fallthru
      _
    // Predicated region
    $region22: #{zinet_forward.1} parent=1 // pred_check
      _
    $region23: #{zinet_forward.1} parent=1 // pred_check_branch
      %32 = sbr.rel (0) target = $region25
    $region24: #{zinet_forward.1} parent=1 // pred_region
      %33 = dma.done [#allocation3], 6272
    $region25: #{zinet_forward.1} parent=1 // pred_fallthru
      _
    %v35 = vld [vmem:[%s0] sm:$0xff]
    %v36 = vld [vmem:[%s0 + $0x8] sm:$0xff]
    %v37 = vld [vmem:[%s0 + $0x10] sm:$0xff]
    %v38 = vld [vmem:[%s0 + $0x18] sm:$0xf]
    %v39 = vld [vmem:[%s0 + $0x1c] sm:$0xff]
    %v40 = vld [vmem:[%s0 + $0x24] sm:$0xff]
    %v41 = vld [vmem:[%s0 + $0x2c] sm:$0xff]
    %v42 = vld [vmem:[%s0 + $0x34] sm:$0xf]
    %v43 = vld [vmem:[#allocation2] sm:$0xf]
    %v44 = vld [vmem:[#allocation2 + $0x4] sm:$0xf]
    %v45 = vld [vmem:[#allocation2 + $0x8] sm:$0xf]
    %v46 = vld [vmem:[#allocation2 + $0xc] sm:$0xf]
    %v47 = vld [vmem:[#allocation2 + $0x10] sm:$0xf]
    %v48 = vld [vmem:[#allocation2 + $0x14] sm:$0xf]
    %v49 = vld [vmem:[#allocation2 + $0x18] sm:$0xf]
    %v50 = vld [vmem:[#allocation2 + $0x1c] sm:$0xf]
    %v51 = vld [vmem:[#allocation2 + $0x20] sm:$0xf]
    %v52 = vld [vmem:[#allocation2 + $0x24] sm:$0xf]
    %v53 = vld [vmem:[#allocation2 + $0x28] sm:$0xf]
    %v54 = vld [vmem:[#allocation2 + $0x2c] sm:$0xf]
    %v55 = vld [vmem:[#allocation2 + $0x30] sm:$0xf]
    %v56 = vld [vmem:[#allocation2 + $0x34] sm:$0xf]
    %v57 = vld [vmem:[#allocation2 + $0x38] sm:$0xf]
    %v58 = vld [vmem:[#allocation2 + $0x3c] sm:$0xf]
    %v59 = vld [vmem:[#allocation2 + $0x40] sm:$0xf]
    %v60 = vld [vmem:[#allocation2 + $0x44] sm:$0xf]
    %v61 = vld [vmem:[#allocation2 + $0x48] sm:$0xf]
    %v62 = vld [vmem:[#allocation2 + $0x4c] sm:$0xf]
    %v63 = vld [vmem:[#allocation2 + $0x50] sm:$0xf]
    %v64 = vld [vmem:[#allocation2 + $0x54] sm:$0xf]
    %v65 = vld [vmem:[#allocation2 + $0x58] sm:$0xf]
    %v66 = vld [vmem:[#allocation2 + $0x5c] sm:$0xf]
    %v67 = vld [vmem:[#allocation2 + $0x60] sm:$0xf]
    %v68 = vld [vmem:[#allocation2 + $0x64] sm:$0xf]
    %v69 = vld [vmem:[#allocation2 + $0x68] sm:$0xf]
    %v70 = vld [vmem:[#allocation2 + $0x6c] sm:$0xf]
    %v71 = vld [vmem:[#allocation2 + $0x70] sm:$0xf]
    %v72 = vld [vmem:[#allocation2 + $0x74] sm:$0xf]
    %v73 = vld [vmem:[#allocation2 + $0x78] sm:$0xf]
    %v74 = vld [vmem:[#allocation2 + $0x7c] sm:$0xf]
    %v75 = vld [vmem:[#allocation2 + $0x80] sm:$0xf]
    %v76 = vld [vmem:[#allocation2 + $0x84] sm:$0xf]
    %v77 = vld [vmem:[#allocation2 + $0x88] sm:$0xf]
    %v78 = vld [vmem:[#allocation2 + $0x8c] sm:$0xf]
    %v79 = vld [vmem:[#allocation2 + $0x90] sm:$0xf]
    %v80 = vld [vmem:[#allocation2 + $0x94] sm:$0xf]
    %v81 = vld [vmem:[#allocation2 + $0x98] sm:$0xf]
    %v82 = vld [vmem:[#allocation2 + $0x9c] sm:$0xf]
    %v83 = vld [vmem:[#allocation2 + $0xa0] sm:$0xf]
    %v84 = vld [vmem:[#allocation2 + $0xa4] sm:$0xf]
    %v85 = vld [vmem:[#allocation2 + $0xa8] sm:$0xf]
    %v86 = vld [vmem:[#allocation2 + $0xac] sm:$0xf]
    %v87 = vld [vmem:[#allocation2 + $0xb0] sm:$0xf]
    %v88 = vld [vmem:[#allocation2 + $0xb4] sm:$0xf]
    %v89 = vld [vmem:[#allocation2 + $0xb8] sm:$0xf]
    %v90 = vld [vmem:[#allocation2 + $0xbc] sm:$0xf]
    %v91 = vld [vmem:[#allocation2 + $0xc0] sm:$0xf]
    %v92 = vld [vmem:[#allocation2 + $0xc4] sm:$0xf]
    %v93 = vld [vmem:[#allocation2 + $0xc8] sm:$0xf]
    %v94 = vld [vmem:[#allocation2 + $0xcc] sm:$0xf]
    %v95 = vld [vmem:[#allocation2 + $0xd0] sm:$0xf]
    %v96 = vld [vmem:[#allocation2 + $0xd4] sm:$0xf]
    %v97 = vld [vmem:[#allocation2 + $0xd8] sm:$0xf]
    %v98 = vld [vmem:[#allocation2 + $0xdc] sm:$0xf]
    %v99 = vld [vmem:[#allocation2 + $0xe0] sm:$0xf]
    %v100 = vld [vmem:[#allocation2 + $0xe4] sm:$0xf]
    %v101 = vld [vmem:[#allocation2 + $0xe8] sm:$0xf]
    %v102 = vld [vmem:[#allocation2 + $0xec] sm:$0xf]
    %v103 = vld [vmem:[#allocation2 + $0xf0] sm:$0xf]
    %v104 = vld [vmem:[#allocation2 + $0xf4] sm:$0xf]
    %v105 = vld [vmem:[#allocation2 + $0xf8] sm:$0xf]
    %v106 = vld [vmem:[#allocation2 + $0xfc] sm:$0xf]
    %v107 = vld [vmem:[#allocation2 + $0x100] sm:$0xf]
    %v108 = vld [vmem:[#allocation2 + $0x104] sm:$0xf]
    %v109 = vld [vmem:[#allocation2 + $0x108] sm:$0xf]
    %v110 = vld [vmem:[#allocation2 + $0x10c] sm:$0xf]
    %v111 = vld [vmem:[#allocation2 + $0x110] sm:$0xf]
    %v112 = vld [vmem:[#allocation2 + $0x114] sm:$0xf]
    %v113 = vld [vmem:[#allocation2 + $0x118] sm:$0xf]
    %v114 = vld [vmem:[#allocation2 + $0x11c] sm:$0xf]
    %v115 = vld [vmem:[#allocation2 + $0x120] sm:$0xf]
    %v116 = vld [vmem:[#allocation2 + $0x124] sm:$0xf]
    %v117 = vld [vmem:[#allocation2 + $0x128] sm:$0xf]
    %v118 = vld [vmem:[#allocation2 + $0x12c] sm:$0xf]
    %v119 = vld [vmem:[#allocation2 + $0x130] sm:$0xf]
    %v120 = vld [vmem:[#allocation2 + $0x134] sm:$0xf]
    %v121 = vld [vmem:[#allocation2 + $0x138] sm:$0xf]
    %v122 = vld [vmem:[#allocation2 + $0x13c] sm:$0xf]
    %v123 = vld [vmem:[#allocation2 + $0x140] sm:$0xf]
    %v124 = vld [vmem:[#allocation2 + $0x144] sm:$0xf]
    %v125 = vld [vmem:[#allocation2 + $0x148] sm:$0xf]
    %v126 = vld [vmem:[#allocation2 + $0x14c] sm:$0xf]
    %v127 = vld [vmem:[#allocation2 + $0x150] sm:$0xf]
    %v128 = vld [vmem:[#allocation2 + $0x154] sm:$0xf]
    %v129 = vld [vmem:[#allocation2 + $0x158] sm:$0xf]
    %v130 = vld [vmem:[#allocation2 + $0x15c] sm:$0xf]
    %v131 = vld [vmem:[#allocation2 + $0x160] sm:$0xf]
    %v132 = vld [vmem:[#allocation2 + $0x164] sm:$0xf]
    %v133 = vld [vmem:[#allocation2 + $0x168] sm:$0xf]
    %v134 = vld [vmem:[#allocation2 + $0x16c] sm:$0xf]
    %v135 = vld [vmem:[#allocation2 + $0x170] sm:$0xf]
    %v136 = vld [vmem:[#allocation2 + $0x174] sm:$0xf]
    %v137 = vld [vmem:[#allocation2 + $0x178] sm:$0xf]
    %v138 = vld [vmem:[#allocation2 + $0x17c] sm:$0xf]
    %v139 = vld [vmem:[#allocation2 + $0x180] sm:$0xf]
    %v140 = vld [vmem:[#allocation2 + $0x184] sm:$0xf]
    %v141 = vld [vmem:[%s2] sm:$0x1]
    %v143 = vlaneseq
    %v144 = vshrl.u32 %v143, 7
    %v145 = vsub.s32 0, %v144
    %v146 = vrot.slane %v141, %v145
    %v156 = vunpack.c.l.b16 %v35
    %v157 = vunpack.c.h.b16 %v35
    %v158 = vunpack.c.l.b16 %v36
    %v159 = vunpack.c.h.b16 %v36
    %v160 = vunpack.c.l.b16 %v37
    %v161 = vunpack.c.h.b16 %v37
    %v162 = vunpack.c.l.b16 %v38
    %v163 = vunpack.c.l.b16 %v39
    %v164 = vunpack.c.h.b16 %v39
    %v165 = vunpack.c.l.b16 %v40
    %v166 = vunpack.c.h.b16 %v40
    %v167 = vunpack.c.l.b16 %v41
    %v168 = vunpack.c.h.b16 %v41
    %v169 = vunpack.c.l.b16 %v42
    %v170 = vpack.c.b16 %v163, %v156
    %v171 = vpack.c.b16 %v164, %v157
    %v172 = vpack.c.b16 %v165, %v158
    %v173 = vpack.c.b16 %v166, %v159
    %v174 = vpack.c.b16 %v167, %v160
    %v175 = vpack.c.b16 %v168, %v161
    %v176 = vpack.c.b16 %v169, %v162
    %v281 = vunpack.c.l.b16 %v43
    %v282 = vunpack.c.l.b16 %v44
    %v283 = vunpack.c.l.b16 %v45
    %v284 = vunpack.c.l.b16 %v46
    %v285 = vunpack.c.l.b16 %v47
    %v286 = vunpack.c.l.b16 %v48
    %v287 = vunpack.c.l.b16 %v49
    %v288 = vunpack.c.l.b16 %v50
    %v289 = vunpack.c.l.b16 %v51
    %v290 = vunpack.c.l.b16 %v52
    %v291 = vunpack.c.l.b16 %v53
    %v292 = vunpack.c.l.b16 %v54
    %v293 = vunpack.c.l.b16 %v55
    %v294 = vunpack.c.l.b16 %v56
    %v295 = vunpack.c.l.b16 %v57
    %v296 = vunpack.c.l.b16 %v58
    %v297 = vunpack.c.l.b16 %v59
    %v298 = vunpack.c.l.b16 %v60
    %v299 = vunpack.c.l.b16 %v61
    %v300 = vunpack.c.l.b16 %v62
    %v301 = vunpack.c.l.b16 %v63
    %v302 = vunpack.c.l.b16 %v64
    %v303 = vunpack.c.l.b16 %v65
    %v304 = vunpack.c.l.b16 %v66
    %v305 = vunpack.c.l.b16 %v67
    %v306 = vunpack.c.l.b16 %v68
    %v307 = vunpack.c.l.b16 %v69
    %v308 = vunpack.c.l.b16 %v70
    %v309 = vunpack.c.l.b16 %v71
    %v310 = vunpack.c.l.b16 %v72
    %v311 = vunpack.c.l.b16 %v73
    %v312 = vunpack.c.l.b16 %v74
    %v313 = vunpack.c.l.b16 %v75
    %v314 = vunpack.c.l.b16 %v76
    %v315 = vunpack.c.l.b16 %v77
    %v316 = vunpack.c.l.b16 %v78
    %v317 = vunpack.c.l.b16 %v79
    %v318 = vunpack.c.l.b16 %v80
    %v319 = vunpack.c.l.b16 %v81
    %v320 = vunpack.c.l.b16 %v82
    %v321 = vunpack.c.l.b16 %v83
    %v322 = vunpack.c.l.b16 %v84
    %v323 = vunpack.c.l.b16 %v85
    %v324 = vunpack.c.l.b16 %v86
    %v325 = vunpack.c.l.b16 %v87
    %v326 = vunpack.c.l.b16 %v88
    %v327 = vunpack.c.l.b16 %v89
    %v328 = vunpack.c.l.b16 %v90
    %v329 = vunpack.c.l.b16 %v91
    %v330 = vunpack.c.l.b16 %v92
    %v331 = vunpack.c.l.b16 %v93
    %v332 = vunpack.c.l.b16 %v94
    %v333 = vunpack.c.l.b16 %v95
    %v334 = vunpack.c.l.b16 %v96
    %v335 = vunpack.c.l.b16 %v97
    %v336 = vunpack.c.l.b16 %v98
    %v337 = vunpack.c.l.b16 %v99
    %v338 = vunpack.c.l.b16 %v100
    %v339 = vunpack.c.l.b16 %v101
    %v340 = vunpack.c.l.b16 %v102
    %v341 = vunpack.c.l.b16 %v103
    %v342 = vunpack.c.l.b16 %v104
    %v343 = vunpack.c.l.b16 %v105
    %v344 = vunpack.c.l.b16 %v106
    %v345 = vunpack.c.l.b16 %v107
    %v346 = vunpack.c.l.b16 %v108
    %v347 = vunpack.c.l.b16 %v109
    %v348 = vunpack.c.l.b16 %v110
    %v349 = vunpack.c.l.b16 %v111
    %v350 = vunpack.c.l.b16 %v112
    %v351 = vunpack.c.l.b16 %v113
    %v352 = vunpack.c.l.b16 %v114
    %v353 = vunpack.c.l.b16 %v115
    %v354 = vunpack.c.l.b16 %v116
    %v355 = vunpack.c.l.b16 %v117
    %v356 = vunpack.c.l.b16 %v118
    %v357 = vunpack.c.l.b16 %v119
    %v358 = vunpack.c.l.b16 %v120
    %v359 = vunpack.c.l.b16 %v121
    %v360 = vunpack.c.l.b16 %v122
    %v361 = vunpack.c.l.b16 %v123
    %v362 = vunpack.c.l.b16 %v124
    %v363 = vunpack.c.l.b16 %v125
    %v364 = vunpack.c.l.b16 %v126
    %v365 = vunpack.c.l.b16 %v127
    %v366 = vunpack.c.l.b16 %v128
    %v367 = vunpack.c.l.b16 %v129
    %v368 = vunpack.c.l.b16 %v130
    %v369 = vunpack.c.l.b16 %v131
    %v370 = vunpack.c.l.b16 %v132
    %v371 = vunpack.c.l.b16 %v133
    %v372 = vunpack.c.l.b16 %v134
    %v373 = vunpack.c.l.b16 %v135
    %v374 = vunpack.c.l.b16 %v136
    %v375 = vunpack.c.l.b16 %v137
    %v376 = vunpack.c.l.b16 %v138
    %v377 = vunpack.c.l.b16 %v139
    %v378 = vunpack.c.l.b16 %v140
    %v379 = vpack.c.b16 %v282, %v281
    %v380 = vpack.c.b16 %v284, %v283
    %v381 = vpack.c.b16 %v286, %v285
    %v382 = vpack.c.b16 %v288, %v287
    %v383 = vpack.c.b16 %v290, %v289
    %v384 = vpack.c.b16 %v292, %v291
    %v385 = vpack.c.b16 %v294, %v293
    %v386 = vpack.c.b16 %v296, %v295
    %v387 = vpack.c.b16 %v298, %v297
    %v388 = vpack.c.b16 %v300, %v299
    %v389 = vpack.c.b16 %v302, %v301
    %v390 = vpack.c.b16 %v304, %v303
    %v391 = vpack.c.b16 %v306, %v305
    %v392 = vpack.c.b16 %v308, %v307
    %v393 = vpack.c.b16 %v310, %v309
    %v394 = vpack.c.b16 %v312, %v311
    %v395 = vpack.c.b16 %v314, %v313
    %v396 = vpack.c.b16 %v316, %v315
    %v397 = vpack.c.b16 %v318, %v317
    %v398 = vpack.c.b16 %v320, %v319
    %v399 = vpack.c.b16 %v322, %v321
    %v400 = vpack.c.b16 %v324, %v323
    %v401 = vpack.c.b16 %v326, %v325
    %v402 = vpack.c.b16 %v328, %v327
    %v403 = vpack.c.b16 %v330, %v329
    %v404 = vpack.c.b16 %v332, %v331
    %v405 = vpack.c.b16 %v334, %v333
    %v406 = vpack.c.b16 %v336, %v335
    %v407 = vpack.c.b16 %v338, %v337
    %v408 = vpack.c.b16 %v340, %v339
    %v409 = vpack.c.b16 %v342, %v341
    %v410 = vpack.c.b16 %v344, %v343
    %v411 = vpack.c.b16 %v346, %v345
    %v412 = vpack.c.b16 %v348, %v347
    %v413 = vpack.c.b16 %v350, %v349
    %v414 = vpack.c.b16 %v352, %v351
    %v415 = vpack.c.b16 %v354, %v353
    %v416 = vpack.c.b16 %v356, %v355
    %v417 = vpack.c.b16 %v358, %v357
    %v418 = vpack.c.b16 %v360, %v359
    %v419 = vpack.c.b16 %v362, %v361
    %v420 = vpack.c.b16 %v364, %v363
    %v421 = vpack.c.b16 %v366, %v365
    %v422 = vpack.c.b16 %v368, %v367
    %v423 = vpack.c.b16 %v370, %v369
    %v424 = vpack.c.b16 %v372, %v371
    %v425 = vpack.c.b16 %v374, %v373
    %v426 = vpack.c.b16 %v376, %v375
    %v427 = vpack.c.b16 %v378, %v377
    %vm477 = vcmask 130048
    %v479 = vsel %vm477, %v176, 0
    %481 = vmatprep.subr.bf16.mxu0 0
    %482 = vmatpush1.bf16.msra.mxu0 %v379
    %483 = vmatprep.subr.bf16.mxu0 0
    %484 = vmatpush1.bf16.msra.mxu0 %v380
    %485 = vmatprep.subr.bf16.mxu0 0
    %486 = vmatpush1.bf16.msra.mxu0 %v381
    %487 = vmatprep.subr.bf16.mxu0 0
    %488 = vmatpush1.bf16.msra.mxu0 %v382
    %489 = vmatprep.subr.bf16.mxu0 0
    %490 = vmatpush1.bf16.msra.mxu0 %v383
    %491 = vmatprep.subr.bf16.mxu0 0
    %492 = vmatpush1.bf16.msra.mxu0 %v384
    %493 = vmatprep.subr.bf16.mxu0 0
    %494 = vmatpush1.bf16.msra.mxu0 %v385
    %495 = vmatprep.subr.bf16.mxu0 0
    %496 = vmatpush1.bf16.msra.mxu0 %v386
    %497 = vmatprep.subr.bf16.mxu0 0
    %498 = vmatpush1.bf16.msra.mxu0 %v387
    %499 = vmatprep.subr.bf16.mxu0 0
    %500 = vmatpush1.bf16.msra.mxu0 %v388
    %501 = vmatprep.subr.bf16.mxu0 0
    %502 = vmatpush1.bf16.msra.mxu0 %v389
    %503 = vmatprep.subr.bf16.mxu0 0
    %504 = vmatpush1.bf16.msra.mxu0 %v390
    %505 = vmatprep.subr.bf16.mxu0 0
    %506 = vmatpush1.bf16.msra.mxu0 %v391
    %507 = vmatprep.subr.bf16.mxu0 0
    %508 = vmatpush1.bf16.msra.mxu0 %v392
    %509 = vmatprep.subr.bf16.mxu0 0
    %510 = vmatpush1.bf16.msra.mxu0 %v393
    %511 = vmatprep.subr.bf16.mxu0 0
    %512 = vmatpush1.bf16.msra.mxu0 %v394
    %513 = vmatprep.mubr.bf16.mxu0 %v171
    %514 = vmatmul.mubr.bf16.gmra.mrb[0].mxu0 %v170
    %v515 = vpop.f32.mrb[0].mxu0
    %v516 = vadd.f32 %v146, %v515
    %v517 = vpop.f32.mrb[0].mxu0
    %v518 = vpop.f32.mrb[0].mxu0
    %v519 = vadd.f32 %v146, %v518
    %v520 = vpop.f32.mrb[0].mxu0
    %521 = vdwg.mxu0
    %522 = vmatprep.subr.bf16.mxu0 0
    %523 = vmatpush1.bf16.msra.mxu0 %v395
    %524 = vmatprep.subr.bf16.mxu0 0
    %525 = vmatpush1.bf16.msra.mxu0 %v396
    %526 = vmatprep.subr.bf16.mxu0 0
    %527 = vmatpush1.bf16.msra.mxu0 %v397
    %528 = vmatprep.subr.bf16.mxu0 0
    %529 = vmatpush1.bf16.msra.mxu0 %v398
    %530 = vmatprep.subr.bf16.mxu0 0
    %531 = vmatpush1.bf16.msra.mxu0 %v399
    %532 = vmatprep.subr.bf16.mxu0 0
    %533 = vmatpush1.bf16.msra.mxu0 %v400
    %534 = vmatprep.subr.bf16.mxu0 0
    %535 = vmatpush1.bf16.msra.mxu0 %v401
    %536 = vmatprep.subr.bf16.mxu0 0
    %537 = vmatpush1.bf16.msra.mxu0 %v402
    %538 = vmatprep.subr.bf16.mxu0 0
    %539 = vmatpush1.bf16.msra.mxu0 %v403
    %540 = vmatprep.subr.bf16.mxu0 0
    %541 = vmatpush1.bf16.msra.mxu0 %v404
    %542 = vmatprep.subr.bf16.mxu0 0
    %543 = vmatpush1.bf16.msra.mxu0 %v405
    %544 = vmatprep.subr.bf16.mxu0 0
    %545 = vmatpush1.bf16.msra.mxu0 %v406
    %546 = vmatprep.subr.bf16.mxu0 0
    %547 = vmatpush1.bf16.msra.mxu0 %v407
    %548 = vmatprep.subr.bf16.mxu0 0
    %549 = vmatpush1.bf16.msra.mxu0 %v408
    %550 = vmatprep.subr.bf16.mxu0 0
    %551 = vmatpush1.bf16.msra.mxu0 %v409
    %552 = vmatprep.subr.bf16.mxu0 0
    %553 = vmatpush1.bf16.msra.mxu0 %v410
    %554 = vmatprep.mubr.bf16.mxu0 %v173
    %555 = vmatmul.mubr.bf16.gmra.mrb[0].mxu0 %v172
    %v556 = vpop.f32.mrb[0].mxu0
    %v557 = vadd.f32 %v516, %v556
    %v558 = vpop.f32.mrb[0].mxu0
    %v559 = vpop.f32.mrb[0].mxu0
    %v560 = vadd.f32 %v519, %v559
    %v561 = vpop.f32.mrb[0].mxu0
    %562 = vdwg.mxu0
    %563 = vmatprep.subr.bf16.mxu0 0
    %564 = vmatpush1.bf16.msra.mxu0 %v411
    %565 = vmatprep.subr.bf16.mxu0 0
    %566 = vmatpush1.bf16.msra.mxu0 %v412
    %567 = vmatprep.subr.bf16.mxu0 0
    %568 = vmatpush1.bf16.msra.mxu0 %v413
    %569 = vmatprep.subr.bf16.mxu0 0
    %570 = vmatpush1.bf16.msra.mxu0 %v414
    %571 = vmatprep.subr.bf16.mxu0 0
    %572 = vmatpush1.bf16.msra.mxu0 %v415
    %573 = vmatprep.subr.bf16.mxu0 0
    %574 = vmatpush1.bf16.msra.mxu0 %v416
    %575 = vmatprep.subr.bf16.mxu0 0
    %576 = vmatpush1.bf16.msra.mxu0 %v417
    %577 = vmatprep.subr.bf16.mxu0 0
    %578 = vmatpush1.bf16.msra.mxu0 %v418
    %579 = vmatprep.subr.bf16.mxu0 0
    %580 = vmatpush1.bf16.msra.mxu0 %v419
    %581 = vmatprep.subr.bf16.mxu0 0
    %582 = vmatpush1.bf16.msra.mxu0 %v420
    %583 = vmatprep.subr.bf16.mxu0 0
    %584 = vmatpush1.bf16.msra.mxu0 %v421
    %585 = vmatprep.subr.bf16.mxu0 0
    %586 = vmatpush1.bf16.msra.mxu0 %v422
    %587 = vmatprep.subr.bf16.mxu0 0
    %588 = vmatpush1.bf16.msra.mxu0 %v423
    %589 = vmatprep.subr.bf16.mxu0 0
    %590 = vmatpush1.bf16.msra.mxu0 %v424
    %591 = vmatprep.subr.bf16.mxu0 0
    %592 = vmatpush1.bf16.msra.mxu0 %v425
    %593 = vmatprep.subr.bf16.mxu0 0
    %594 = vmatpush1.bf16.msra.mxu0 %v426
    %595 = vmatprep.mubr.bf16.mxu0 %v175
    %596 = vmatmul.mubr.bf16.gmra.mrb[0].mxu0 %v174
    %v597 = vpop.f32.mrb[0].mxu0
    %v598 = vadd.f32 %v557, %v597
    %v599 = vpop.f32.mrb[0].mxu0
    %v600 = vpop.f32.mrb[0].mxu0
    %v601 = vadd.f32 %v560, %v600
    %v602 = vpop.f32.mrb[0].mxu0
    %603 = vdwg.mxu0
    %604 = vmatprep.subr.bf16.mxu0 0
    %605 = vmatpush1.bf16.msra.mxu0 %v427
    %606 = vmatprep.subr.bf16.mxu0 0
    %607 = vmatpush1.bf16.msra.mxu0 0
    %608 = vmatprep.subr.bf16.mxu0 0
    %609 = vmatpush1.bf16.msra.mxu0 0
    %610 = vmatprep.subr.bf16.mxu0 0
    %611 = vmatpush1.bf16.msra.mxu0 0
    %612 = vmatprep.subr.bf16.mxu0 0
    %613 = vmatpush1.bf16.msra.mxu0 0
    %614 = vmatprep.subr.bf16.mxu0 0
    %615 = vmatpush1.bf16.msra.mxu0 0
    %616 = vmatprep.subr.bf16.mxu0 0
    %617 = vmatpush1.bf16.msra.mxu0 0
    %618 = vmatprep.subr.bf16.mxu0 0
    %619 = vmatpush1.bf16.msra.mxu0 0
    %620 = vmatprep.subr.bf16.mxu0 0
    %621 = vmatpush1.bf16.msra.mxu0 0
    %622 = vmatprep.subr.bf16.mxu0 0
    %623 = vmatpush1.bf16.msra.mxu0 0
    %624 = vmatprep.subr.bf16.mxu0 0
    %625 = vmatpush1.bf16.msra.mxu0 0
    %626 = vmatprep.subr.bf16.mxu0 0
    %627 = vmatpush1.bf16.msra.mxu0 0
    %628 = vmatprep.subr.bf16.mxu0 0
    %629 = vmatpush1.bf16.msra.mxu0 0
    %630 = vmatprep.subr.bf16.mxu0 0
    %631 = vmatpush1.bf16.msra.mxu0 0
    %632 = vmatprep.subr.bf16.mxu0 0
    %633 = vmatpush1.bf16.msra.mxu0 0
    %634 = vmatprep.subr.bf16.mxu0 0
    %635 = vmatpush1.bf16.msra.mxu0 0
    %636 = vmatprep.mubr.bf16.mxu0 0
    %637 = vmatmul.mubr.bf16.gmra.mrb[0].mxu0 %v479
    %v638 = vpop.f32.mrb[0].mxu0
    %v639 = vadd.f32 %v598, %v638
    %v640 = vpop.f32.mrb[0].mxu0
    %v641 = vpop.f32.mrb[0].mxu0
    %v642 = vadd.f32 %v601, %v641
    %v643 = vpop.f32.mrb[0].mxu0
    %644 = vdwg.mxu0
    %v645 = vmax.f32 %v639, 0.0
    %v646 = vmax.f32 %v642, 0.0
    %v647 = vpack.c.bf16 %v646, %v645
    %v648 = vld [vmem:[%s3] sm:$0xf]
    %v649 = vld [vmem:[%s3 + $0x4] sm:$0xf]
    %v650 = vld [vmem:[%s3 + $0x8] sm:$0xf]
    %v651 = vld [vmem:[%s3 + $0xc] sm:$0xf]
    %v652 = vld [vmem:[%s3 + $0x10] sm:$0xf]
    %v653 = vld [vmem:[%s3 + $0x14] sm:$0xf]
    %v654 = vld [vmem:[%s3 + $0x18] sm:$0xf]
    %v655 = vld [vmem:[%s3 + $0x1c] sm:$0xf]
    %v656 = vld [vmem:[%s3 + $0x20] sm:$0xf]
    %v657 = vld [vmem:[%s3 + $0x24] sm:$0xf]
    %v658 = vld [vmem:[%s3 + $0x28] sm:$0xf]
    %v659 = vld [vmem:[%s3 + $0x2c] sm:$0xf]
    %v660 = vld [vmem:[%s3 + $0x30] sm:$0xf]
    %v661 = vld [vmem:[%s3 + $0x34] sm:$0xf]
    %v662 = vld [vmem:[%s3 + $0x38] sm:$0xf]
    %v663 = vld [vmem:[%s3 + $0x3c] sm:$0xf]
    %v664 = vld [vmem:[%s4] sm:$0x1]
    %v666 = vlaneseq
    %v667 = vshrl.u32 %v666, 7
    %v668 = vsub.s32 0, %v667
    %v669 = vrot.slane %v664, %v668
    %v687 = vunpack.c.l.b16 %v648
    %v688 = vunpack.c.l.b16 %v649
    %v689 = vunpack.c.l.b16 %v650
    %v690 = vunpack.c.l.b16 %v651
    %v691 = vunpack.c.l.b16 %v652
    %v692 = vunpack.c.l.b16 %v653
    %v693 = vunpack.c.l.b16 %v654
    %v694 = vunpack.c.l.b16 %v655
    %v695 = vunpack.c.l.b16 %v656
    %v696 = vunpack.c.l.b16 %v657
    %v697 = vunpack.c.l.b16 %v658
    %v698 = vunpack.c.l.b16 %v659
    %v699 = vunpack.c.l.b16 %v660
    %v700 = vunpack.c.l.b16 %v661
    %v701 = vunpack.c.l.b16 %v662
    %v702 = vunpack.c.l.b16 %v663
    %v703 = vpack.c.b16 %v688, %v687
    %v704 = vpack.c.b16 %v690, %v689
    %v705 = vpack.c.b16 %v692, %v691
    %v706 = vpack.c.b16 %v694, %v693
    %v707 = vpack.c.b16 %v696, %v695
    %v708 = vpack.c.b16 %v698, %v697
    %v709 = vpack.c.b16 %v700, %v699
    %v710 = vpack.c.b16 %v702, %v701
    %719 = vmatprep.subr.bf16.mxu0 0
    %720 = vmatpush1.bf16.msra.mxu0 %v703
    %721 = vmatprep.subr.bf16.mxu0 0
    %722 = vmatpush1.bf16.msra.mxu0 %v704
    %723 = vmatprep.subr.bf16.mxu0 0
    %724 = vmatpush1.bf16.msra.mxu0 %v705
    %725 = vmatprep.subr.bf16.mxu0 0
    %726 = vmatpush1.bf16.msra.mxu0 %v706
    %727 = vmatprep.subr.bf16.mxu0 0
    %728 = vmatpush1.bf16.msra.mxu0 %v707
    %729 = vmatprep.subr.bf16.mxu0 0
    %730 = vmatpush1.bf16.msra.mxu0 %v708
    %731 = vmatprep.subr.bf16.mxu0 0
    %732 = vmatpush1.bf16.msra.mxu0 %v709
    %733 = vmatprep.subr.bf16.mxu0 0
    %734 = vmatpush1.bf16.msra.mxu0 %v710
    %735 = vmatprep.subr.bf16.mxu0 0
    %736 = vmatpush1.bf16.msra.mxu0 0
    %737 = vmatprep.subr.bf16.mxu0 0
    %738 = vmatpush1.bf16.msra.mxu0 0
    %739 = vmatprep.subr.bf16.mxu0 0
    %740 = vmatpush1.bf16.msra.mxu0 0
    %741 = vmatprep.subr.bf16.mxu0 0
    %742 = vmatpush1.bf16.msra.mxu0 0
    %743 = vmatprep.subr.bf16.mxu0 0
    %744 = vmatpush1.bf16.msra.mxu0 0
    %745 = vmatprep.subr.bf16.mxu0 0
    %746 = vmatpush1.bf16.msra.mxu0 0
    %747 = vmatprep.subr.bf16.mxu0 0
    %748 = vmatpush1.bf16.msra.mxu0 0
    %749 = vmatprep.subr.bf16.mxu0 0
    %750 = vmatpush1.bf16.msra.mxu0 0
    %751 = vmatprep.mubr.bf16.mxu0 0
    %752 = vmatmul.mubr.bf16.gmra.mrb[0].mxu0 %v647
    %v753 = vpop.f32.mrb[0].mxu0
    %v754 = vadd.f32 %v669, %v753
    %v755 = vpop.f32.mrb[0].mxu0
    %v756 = vpop.f32.mrb[0].mxu0
    %v757 = vadd.f32 %v669, %v756
    %v758 = vpop.f32.mrb[0].mxu0
    %759 = vdwg.mxu0
    %760 = vst [vmem:[%s5] sm:$0xff] %v754
    %761 = vst [vmem:[%s5 + $0x8] sm:$0xff] %v757
    // Predicated region
    $region26: #{zinet_forward.1} parent=1 // pred_check
      _
    $region27: #{zinet_forward.1} parent=1 // pred_check_branch
      %763 = sbr.rel (0) target = $region29
    $region28: #{zinet_forward.1} parent=1 // pred_region
      _
    $region29: #{zinet_forward.1} parent=1 // pred_fallthru
      _
    // Predicated region
    $region30: #{zinet_forward.1} parent=1 // pred_check
      _
    $region31: #{zinet_forward.1} parent=1 // pred_check_branch
      %765 = sbr.rel (0) target = $region33
    $region32: #{zinet_forward.1} parent=1 // pred_region
      _
    $region33: #{zinet_forward.1} parent=1 // pred_fallthru
      _
    %766 = vsyncpa [#allocation3], 1

</llo_original>
